<compile_context>
chip_gen: v6e
topology: v6e:2x2x1
jax: 0.10.0
libtpu: 0.0.40
codegen_flags: <defaults>
</compile_context>

<pallas_src>
import functools

import jax
import jax.numpy as jnp
from jax.experimental import pallas as pl
from jax.experimental.pallas import tpu as pltpu


def _round_up(x, m):
    return (x + m - 1) // m * m


def _specified_expert_loss_kernel(*refs, n_layers, n_tokens, out_width, stacked):
    """One token tile.

    Inputs (stacked=False): refs[0:L]   -> L logits blocks, each (tn, E), native dtype
    Inputs (stacked=True):  refs[0]     -> one (L, tn, E) logits block, native dtype
    refs[-2]: labels block (1, tn) int32 (lane-dense; -1 on padding)
    refs[-1]: output block (1, 1, out_width) f32:
              lane 0      = sum over valid tokens of -log p[label]
              lanes 1..E  = per-expert argmax tally over valid tokens
              other lanes = 0
    """
    if stacked:
        logits_ref, labels_ref, out_ref = refs
        layers = [logits_ref[l] for l in range(n_layers)]           # each (tn, E)
    else:
        layers = [refs[i][...] for i in range(n_layers)]             # each (tn, E)
        labels_ref = refs[n_layers]
        out_ref = refs[n_layers + 1]

    tn, n_exp = layers[0].shape

    # Mean over layers, upcast after the (native-dtype) loads; single f32 temp.
    acc = layers[0].astype(jnp.float32)
    for x in layers[1:]:
        acc = acc + x.astype(jnp.float32)
    avg = acc / jnp.float32(n_layers)                                 # (tn, E)

    # Valid-token mask for the (possibly partial, unpadded) last tile.  NaN-safe:
    # replace the unspecified tail rows before exp/log instead of multiplying by 0.
    tile = pl.program_id(0)
    tok = jax.lax.broadcasted_iota(jnp.int32, (tn, 1), 0) + tile * tn
    valid = tok < n_tokens                                            # (tn, 1) bool
    avg = jnp.where(valid, avg, 0.0)

    # Labels arrive lane-dense (1, tn); move them onto sublanes once (cheap relayout).
    labels_col = jnp.transpose(labels_ref[...], (1, 0))               # (tn, 1) int32
    iota_e = jax.lax.broadcasted_iota(jnp.int32, (tn, n_exp), 1)      # expert index per lane
    onehot = (iota_e == labels_col).astype(jnp.float32)               # (tn, E)

    # Numerically stable cross-entropy: -log p[label] = (m + log sum exp) - avg[label].
    m = jnp.max(avg, axis=-1, keepdims=True)                          # (tn, 1)
    sumexp = jnp.sum(jnp.exp(avg - m), axis=-1, keepdims=True)        # (tn, 1)
    lse = m + jnp.log(sumexp)                                         # (tn, 1)
    row_nll = lse - jnp.sum(onehot * avg, axis=-1, keepdims=True)     # (tn, 1)

    # First-occurrence argmax (matches torch/jnp argmax tie-breaking).
    first_idx = jnp.min(jnp.where(avg == m, iota_e, n_exp),
                        axis=-1, keepdims=True)                       # (tn, 1) int32

    # Compose one lane-dense output row: lane 0 <- nll, lane e+1 <- argmax==e.
    lane = jax.lax.broadcasted_iota(jnp.int32, (tn, out_width), 1)
    contrib = jnp.where(lane == 0, row_nll,
                        jnp.where(lane - 1 == first_idx, 1.0, 0.0))   # (tn, W)
    contrib = jnp.where(valid, contrib, 0.0)
    out_ref[...] = jnp.sum(contrib, axis=0, keepdims=True).reshape(1, 1, out_width)


def specified_expert_loss(router_logits, router_labels, wex, *, tile_tokens=None):
    """Returns (loss_scalar, tally[num_experts]); mirrors SpecifiedExpertLoss.forward.

    The per-call tally vector is returned (the caller accumulates it, standing in for the
    module's stateful self.tally buffer)."""
    if router_logits is None or router_labels is None:
        return jnp.float32(0.0), None

    stacked = not isinstance(router_logits, (tuple, list))
    if stacked:
        arr = router_logits
        if arr.ndim == 2:
            arr = arr[None]
        L, N, E = arr.shape
        dtype = arr.dtype
        layer_list = None
    else:
        layer_list = list(router_logits)                              # no jnp.stack copy
        L = len(layer_list)
        N, E = layer_list[0].shape
        dtype = layer_list[0].dtype
        arr = None

    labels = router_labels.astype(jnp.int32).reshape(N)

    # ---- VMEM-aware token-tile sizing (per-generation: 64 MiB v7x, 128 MiB v5e/v6e) ----
    try:
        vmem_cap = int(pltpu.get_tpu_info().vmem_capacity_bytes)
    except Exception:
        vmem_cap = 64 * 1024 * 1024                                   # conservative fallback

    out_width = _round_up(E + 1, 128)                                 # merged output row width
    lane_e = _round_up(E, 128)                                        # lanes one token row occupies
    isz = jnp.dtype(dtype).itemsize
    # double-buffered native input blocks + f32 working set (avg/exp/onehot/contrib/iotas)
    per_token = 2 * L * lane_e * isz + (4 * lane_e + out_width + 64) * 4
    budget = max(vmem_cap // 3, 8 * 1024 * 1024)
    tn_cap = max(128, min(4096, (budget // per_token) // 128 * 128))
    if tile_tokens is not None:
        tn_cap = max(128, _round_up(int(tile_tokens), 128))

    if N <= tn_cap:
        if N >= 1024 and tile_tokens is None:
            # Split so both v7x TensorCores get work (harmless on single-core chips).
            tn = _round_up(pl.cdiv(N, 2), 128)
        else:
            tn = N                                                    # block == full token axis
    else:
        tn = tn_cap                                                   # multiple of 128
    num_tiles = pl.cdiv(N, tn)

    # Labels cross HBM lane-dense; only this tiny int32 array is padded (logits are NOT).
    n_lab = num_tiles * tn
    if n_lab != N:
        labels = jnp.pad(labels, (0, n_lab - N), constant_values=-1)
    labels_row = labels.reshape(1, n_lab)

    if stacked:
        in_specs = [pl.BlockSpec((L, tn, E), lambda i: (0, i, 0))]
        operands = [arr]
    else:
        in_specs = [pl.BlockSpec((tn, E), lambda i: (i, 0)) for _ in range(L)]
        operands = list(layer_list)
    in_specs.append(pl.BlockSpec((1, tn), lambda i: (0, i)))
    operands.append(labels_row)

    kernel = functools.partial(
        _specified_expert_loss_kernel,
        n_layers=L, n_tokens=N, out_width=out_width, stacked=stacked)

    vmem_limit = int(max(32 * 1024 * 1024, min(vmem_cap * 3 // 4, 112 * 1024 * 1024)))

    parts = pl.pallas_call(
        kernel,
        grid=(num_tiles,),
        in_specs=in_specs,
        out_specs=pl.BlockSpec((1, 1, out_width), lambda i: (i, 0, 0)),
        out_shape=jax.ShapeDtypeStruct((num_tiles, 1, out_width), jnp.float32),
        compiler_params=pltpu.CompilerParams(
            dimension_semantics=("parallel",),
            vmem_limit_bytes=vmem_limit,
        ),
    )(*operands)

    # Finalize outside the kernel: wEX and the 1/N of the 'mean' reduction on scalars.
    nll_total = jnp.sum(parts[:, 0, 0])
    tally = jnp.sum(parts[:, 0, 1:1 + E], axis=0)                     # (E,)
    loss = jnp.asarray(wex, jnp.float32) * (nll_total / N)
    return loss, tally


def _reference(router_logits, router_labels, wex):
    if isinstance(router_logits, (tuple, list)):
        router_logits = jnp.stack(router_logits, axis=0)
    if router_logits.ndim == 2:
        router_logits = router_logits[None]
    logits = router_logits.astype(jnp.float32)
    avg = jnp.mean(logits, axis=0)
    logp = jax.nn.log_softmax(avg, axis=-1)
    nll = -jnp.mean(logp[jnp.arange(avg.shape[0]), router_labels])
    onehot = jax.nn.one_hot(jnp.argmax(avg, axis=-1), avg.shape[-1], dtype=jnp.float32)
    return jnp.float32(wex) * nll, jnp.sum(onehot, axis=0)


if __name__ == "__main__":
    wEX = 0.01
    key = jax.random.PRNGKey(0)
    k1, k2, k3, k4, k5, k6, k7 = jax.random.split(key, 7)

    # ---- Case 1: tuple of f32 layers, tiny config (num_experts=4), single full-array tile
    L, N, E = 3, 8, 4
    router_logits = tuple(
        jax.random.normal(jax.random.fold_in(k1, i), (N, E), dtype=jnp.float32)
        for i in range(L)
    )
    router_labels = jax.random.randint(k2, (N,), 0, E, dtype=jnp.int32)
    loss, tally = specified_expert_loss(router_logits, router_labels, wEX)
    jax.block_until_ready((loss, tally))
    ref_loss, ref_tally = _reference(router_logits, router_labels, wEX)
    assert jnp.allclose(loss, ref_loss, rtol=1e-5, atol=1e-5), (loss, ref_loss)
    assert jnp.allclose(tally, ref_tally), (tally, ref_tally)

    # ---- Case 2: pre-stacked bf16 logits, multi-tile grid with masked (unpadded) tail ----
    L2, N2, E2 = 4, 300, 8
    base = jax.random.normal(k3, (L2, N2, E2), dtype=jnp.float32)
    winner = jax.random.randint(k4, (N2,), 0, E2, dtype=jnp.int32)
    # Clear per-token argmax so bf16 rounding cannot create tie ambiguity vs. the reference.
    logits2 = (base + 4.0 * jax.nn.one_hot(winner, E2, dtype=jnp.float32)[None]).astype(jnp.bfloat16)
    labels2 = jax.random.randint(k5, (N2,), 0, E2, dtype=jnp.int32)
    loss2, tally2 = specified_expert_loss(logits2, labels2, wEX, tile_tokens=128)
    jax.block_until_ready((loss2, tally2))
    ref_loss2, ref_tally2 = _reference(logits2, labels2, wEX)
    assert jnp.allclose(loss2, ref_loss2, rtol=1e-5, atol=1e-5), (loss2, ref_loss2)
    assert jnp.allclose(tally2, ref_tally2), (tally2, ref_tally2)

    # ---- Case 3: tuple path, multi-tile with non-divisible tail, E=16 ----
    L3, N3, E3 = 2, 200, 16
    router_logits3 = tuple(
        jax.random.normal(jax.random.fold_in(k6, i), (N3, E3), dtype=jnp.float32)
        for i in range(L3)
    )
    labels3 = jax.random.randint(k7, (N3,), 0, E3, dtype=jnp.int32)
    loss3, tally3 = specified_expert_loss(router_logits3, labels3, wEX, tile_tokens=128)
    jax.block_until_ready((loss3, tally3))
    ref_loss3, ref_tally3 = _reference(router_logits3, labels3, wEX)
    assert jnp.allclose(loss3, ref_loss3, rtol=1e-5, atol=1e-5), (loss3, ref_loss3)
    assert jnp.allclose(tally3, ref_tally3), (tally3, ref_tally3)

    print("KERNEL_OK")
</pallas_src>

<mosaic_0001>
module attributes {stable_mosaic.version = 11 : i64} {
  func.func @_specified_expert_loss_kernel(%arg0: i32, %arg1: memref<8x4xf32, #tpu.memory_space<vmem>>, %arg2: memref<8x4xf32, #tpu.memory_space<vmem>>, %arg3: memref<8x4xf32, #tpu.memory_space<vmem>>, %arg4: memref<1x8xi32, #tpu.memory_space<vmem>>, %arg5: memref<1x1x128xf32, #tpu.memory_space<vmem>>) attributes {dimension_semantics = [#tpu.dimension_semantics<parallel>], iteration_bounds = array<i64: 1>, scalar_prefetch = 0 : i64, scratch_operands = 0 : i64, tpu.core_type = #tpu.core_type<tc>, window_params = [{transform_indices = @transform_0, window_bounds = array<i64: 8, 4>}, {transform_indices = @transform_1, window_bounds = array<i64: 8, 4>}, {transform_indices = @transform_2, window_bounds = array<i64: 8, 4>}, {transform_indices = @transform_3, window_bounds = array<i64: 1, 8>}, {transform_indices = @transform_4, window_bounds = array<i64: 1, 1, 128>}]} {
    %c0 = arith.constant 0 : index
    %c0_0 = arith.constant 0 : index
    %0 = vector.load %arg1[%c0, %c0_0] : memref<8x4xf32, #tpu.memory_space<vmem>>, vector<8x4xf32>
    %c0_1 = arith.constant 0 : index
    %c0_2 = arith.constant 0 : index
    %1 = vector.load %arg2[%c0_1, %c0_2] : memref<8x4xf32, #tpu.memory_space<vmem>>, vector<8x4xf32>
    %c0_3 = arith.constant 0 : index
    %c0_4 = arith.constant 0 : index
    %2 = vector.load %arg3[%c0_3, %c0_4] : memref<8x4xf32, #tpu.memory_space<vmem>>, vector<8x4xf32>
    %3 = arith.addf %0, %1 : vector<8x4xf32>
    %4 = arith.addf %3, %2 : vector<8x4xf32>
    %cst = arith.constant 3.000000e+00 : f32
    %5 = vector.broadcast %cst : f32 to vector<8x4xf32>
    %6 = arith.divf %4, %5 : vector<8x4xf32>
    %7 = tpu.iota {dimensions = array<i32: 0>} : vector<8x1xi32>
    %c8_i32 = arith.constant 8 : i32
    %8 = arith.muli %arg0, %c8_i32 : i32
    %9 = vector.broadcast %8 : i32 to vector<8x1xi32>
    %10 = arith.addi %7, %9 : vector<8x1xi32>
    %c8_i32_5 = arith.constant 8 : i32
    %11 = vector.broadcast %c8_i32_5 : i32 to vector<8x1xi32>
    %12 = arith.cmpi slt, %10, %11 : vector<8x1xi32>
    %cst_6 = arith.constant 0.000000e+00 : f32
    %13 = vector.shape_cast %12 : vector<8x1xi1> to vector<8x1xi1>
    %14 = vector.broadcast %13 : vector<8x1xi1> to vector<8x4xi1>
    %15 = vector.broadcast %cst_6 : f32 to vector<8x4xf32>
    %16 = arith.select %14, %6, %15 : vector<8x4xi1>, vector<8x4xf32>
    %c0_7 = arith.constant 0 : index
    %c0_8 = arith.constant 0 : index
    %17 = vector.load %arg4[%c0_7, %c0_8] : memref<1x8xi32, #tpu.memory_space<vmem>>, vector<1x8xi32>
    %18 = tpu.transpose %17, [1, 0] : vector<1x8xi32> -> vector<8x1xi32>
    %19 = tpu.iota {dimensions = array<i32: 1>} : vector<8x4xi32>
    %20 = vector.broadcast %18 : vector<8x1xi32> to vector<8x4xi32>
    %21 = arith.cmpi eq, %19, %20 : vector<8x4xi32>
    %22 = arith.extui %21 : vector<8x4xi1> to vector<8x4xi32>
    %23 = arith.sitofp %22 : vector<8x4xi32> to vector<8x4xf32>
    %cst_9 = arith.constant dense<0xFF800000> : vector<8xf32>
    %24 = vector.multi_reduction <maximumf>, %16, %cst_9 [1] : vector<8x4xf32> to vector<8xf32>
    %25 = vector.shape_cast %24 : vector<8xf32> to vector<8x1xf32>
    %26 = vector.broadcast %25 : vector<8x1xf32> to vector<8x4xf32>
    %27 = arith.subf %16, %26 : vector<8x4xf32>
    %28 = math.exp %27 : vector<8x4xf32>
    %cst_10 = arith.constant dense<0.000000e+00> : vector<8xf32>
    %29 = vector.multi_reduction <add>, %28, %cst_10 [1] : vector<8x4xf32> to vector<8xf32>
    %30 = vector.shape_cast %29 : vector<8xf32> to vector<8x1xf32>
    %31 = math.log %30 : vector<8x1xf32>
    %32 = arith.addf %25, %31 : vector<8x1xf32>
    %33 = arith.mulf %23, %16 : vector<8x4xf32>
    %cst_11 = arith.constant dense<0.000000e+00> : vector<8xf32>
    %34 = vector.multi_reduction <add>, %33, %cst_11 [1] : vector<8x4xf32> to vector<8xf32>
    %35 = vector.shape_cast %34 : vector<8xf32> to vector<8x1xf32>
    %36 = arith.subf %32, %35 : vector<8x1xf32>
    %37 = vector.broadcast %25 : vector<8x1xf32> to vector<8x4xf32>
    %38 = arith.cmpf oeq, %16, %37 : vector<8x4xf32>
    %c4_i32 = arith.constant 4 : i32
    %39 = vector.broadcast %c4_i32 : i32 to vector<8x4xi32>
    %40 = arith.select %38, %19, %39 : vector<8x4xi1>, vector<8x4xi32>
    %cst_12 = arith.constant dense<2147483647> : vector<8xi32>
    %41 = vector.multi_reduction <minsi>, %40, %cst_12 [1] : vector<8x4xi32> to vector<8xi32>
    %42 = vector.shape_cast %41 : vector<8xi32> to vector<8x1xi32>
    %43 = tpu.iota {dimensions = array<i32: 1>} : vector<8x128xi32>
    %c0_i32 = arith.constant 0 : i32
    %44 = vector.broadcast %c0_i32 : i32 to vector<8x128xi32>
    %45 = arith.cmpi eq, %43, %44 : vector<8x128xi32>
    %c1_i32 = arith.constant 1 : i32
    %46 = vector.broadcast %c1_i32 : i32 to vector<8x128xi32>
    %47 = arith.subi %43, %46 : vector<8x128xi32>
    %48 = vector.broadcast %42 : vector<8x1xi32> to vector<8x128xi32>
    %49 = arith.cmpi eq, %47, %48 : vector<8x128xi32>
    %cst_13 = arith.constant 1.000000e+00 : f32
    %cst_14 = arith.constant 0.000000e+00 : f32
    %50 = vector.broadcast %cst_13 : f32 to vector<8x128xf32>
    %51 = vector.broadcast %cst_14 : f32 to vector<8x128xf32>
    %52 = arith.select %49, %50, %51 : vector<8x128xi1>, vector<8x128xf32>
    %53 = vector.shape_cast %36 : vector<8x1xf32> to vector<8x1xf32>
    %54 = vector.broadcast %53 : vector<8x1xf32> to vector<8x128xf32>
    %55 = arith.select %45, %54, %52 : vector<8x128xi1>, vector<8x128xf32>
    %cst_15 = arith.constant 0.000000e+00 : f32
    %56 = vector.shape_cast %12 : vector<8x1xi1> to vector<8x1xi1>
    %57 = vector.broadcast %56 : vector<8x1xi1> to vector<8x128xi1>
    %58 = vector.broadcast %cst_15 : f32 to vector<8x128xf32>
    %59 = arith.select %57, %55, %58 : vector<8x128xi1>, vector<8x128xf32>
    %cst_16 = arith.constant dense<0.000000e+00> : vector<128xf32>
    %60 = vector.multi_reduction <add>, %59, %cst_16 [0] : vector<8x128xf32> to vector<128xf32>
    %61 = vector.shape_cast %60 : vector<128xf32> to vector<1x128xf32>
    %62 = vector.shape_cast %61 : vector<1x128xf32> to vector<1x1x128xf32>
    %c0_17 = arith.constant 0 : index
    %c0_18 = arith.constant 0 : index
    %c0_19 = arith.constant 0 : index
    %63 = vector.load %arg5[%c0_17, %c0_18, %c0_19] : memref<1x1x128xf32, #tpu.memory_space<vmem>>, vector<1x1x128xf32>
    tpu.vector_store %arg5[%c0_17, %c0_18, %c0_19], %62 {strides = array<i32>} : memref<1x1x128xf32, #tpu.memory_space<vmem>>, vector<1x1x128xf32>,
    return
  }
  func.func @transform_0(%arg0: i32) -> (i32, i32) {
    %c0_i32 = arith.constant 0 : i32
    %c0_i32_0 = arith.constant 0 : i32
    return %arg0, %c0_i32 : i32, i32
  }
  func.func @transform_1(%arg0: i32) -> (i32, i32) {
    %c0_i32 = arith.constant 0 : i32
    %c0_i32_0 = arith.constant 0 : i32
    return %arg0, %c0_i32 : i32, i32
  }
  func.func @transform_2(%arg0: i32) -> (i32, i32) {
    %c0_i32 = arith.constant 0 : i32
    %c0_i32_0 = arith.constant 0 : i32
    return %arg0, %c0_i32 : i32, i32
  }
  func.func @transform_3(%arg0: i32) -> (i32, i32) {
    %c0_i32 = arith.constant 0 : i32
    %c0_i32_0 = arith.constant 0 : i32
    return %c0_i32, %arg0 : i32, i32
  }
  func.func @transform_4(%arg0: i32) -> (i32, i32, i32) {
    %c0_i32 = arith.constant 0 : i32
    %c0_i32_0 = arith.constant 0 : i32
    %c0_i32_1 = arith.constant 0 : i32
    return %arg0, %c0_i32, %c0_i32_0 : i32, i32, i32
  }
}

</mosaic_0001>

<llo_original>
// kernel: tpu_custom_call.1
$region0: #{tpu_custom_call.1}
  #allocation0 [shape = 'u32[]', space=smem, size = 0x4, offset = 0x4, fixed_abs, tag = 'smem constant byte address 0x4 - core index']
  #allocation1 [shape = 'u32[144,128]{1,0:T(1,128)}', space=vmem, size = 0x12000, scoped, tag = 'internal scratch']
  %s0 = inlined_call_operand.vmem [shape: f32[8,4], index: 0, kind: input, shape index: {}]
  %s1 = inlined_call_operand.vmem [shape: f32[8,4], index: 1, kind: input, shape index: {}]
  %s2 = inlined_call_operand.vmem [shape: f32[8,4], index: 2, kind: input, shape index: {}]
  %s3 = inlined_call_operand.vmem [shape: s32[1,8], index: 3, kind: input, shape index: {}]
  %s4 = inlined_call_operand.hbm [shape: f32[1,1,128], index: 4, kind: output, shape index: {}]
  %s5 = sld [smem:[#allocation0]]
  $region26: #{tpu_custom_call.1} parent=0
    _
  %s7 = ssub.s32 1, %s5
  %s8 = scalar_select 0, %s7, %s5
  $region1: #{tpu_custom_call.1} parent=0
    #allocation2 [shape = 'u8[512]{0}', space=vmem, size = 0x400, scoped, tag = 'output window, operand 0, single buffered']
    #allocation3 [shape = 's32[1]{0}', space=sflag, size = 0x4, scoped, tag = 'scoped memory for tpu_custom_call.1']
    %9 = vsyncpa [#allocation3], 0
    // Predicated region
    $region2: #{tpu_custom_call.1} parent=1 // pred_check
      _
    $region3: #{tpu_custom_call.1} parent=1 // pred_check_branch
      %11 = sbr.rel (0) target = $region5
    $region4: #{tpu_custom_call.1} parent=1 // pred_region
      _
    $region5: #{tpu_custom_call.1} parent=1 // pred_fallthru
      _
    // Predicated region
    $region6: #{tpu_custom_call.1} parent=1 // pred_check
      _
    $region7: #{tpu_custom_call.1} parent=1 // pred_check_branch
      %13 = sbr.rel (0) target = $region9
    $region8: #{tpu_custom_call.1} parent=1 // pred_region
      _
    $region9: #{tpu_custom_call.1} parent=1 // pred_fallthru
      _
    // Predicated region
    $region10: #{tpu_custom_call.1} parent=1 // pred_check
      _
    $region11: #{tpu_custom_call.1} parent=1 // pred_check_branch
      %15 = sbr.rel (0) target = $region13
    $region12: #{tpu_custom_call.1} parent=1 // pred_region
      _
    $region13: #{tpu_custom_call.1} parent=1 // pred_fallthru
      _
    // Predicated region
    $region14: #{tpu_custom_call.1} parent=1 // pred_check
      _
    $region15: #{tpu_custom_call.1} parent=1 // pred_check_branch
      %17 = sbr.rel (0) target = $region17
    $region16: #{tpu_custom_call.1} parent=1 // pred_region
      _
    $region17: #{tpu_custom_call.1} parent=1 // pred_fallthru
      _
    %v18 = vld [vmem:[%s0] sm:$0xff]
    %v19 = vld [vmem:[%s1] sm:$0xff]
    %v20 = vld [vmem:[%s2] sm:$0xff]
    %v21 = vadd.f32 %v18, %v19
    %v22 = vadd.f32 %v21, %v20
    %v23 = vrcp.pop 3.0
    %v24 = vmul.f32 %v22, %v23
    %v25 = vlaneseq
    %v26 = vshrl.u32 %v25, 7
    %s27 = smul.u32 0, 8
    %v28 = vstv %s27
    %v29 = vadd.s32 %v26, %v28
    %vm30 = vcmp.lt.s32.totalorder %v29, 8
    %v31 = vsel %vm30, 1, 0
    %vm32 = vcmp.eq.s32.totalorder %v31, 1
    %v33 = vsel %vm32, %v24, 0.0
    %v34 = vld [vmem:[%s3] sm:$0x1]
    %35 = vxpose.xlu0.b32.start [1/16] %v34, 128
    %36 = vxpose.xlu0.b32.cont [2/16] 0, 128
    %37 = vxpose.xlu0.b32.cont [3/16] 0, 128
    %38 = vxpose.xlu0.b32.cont [4/16] 0, 128
    %39 = vxpose.xlu0.b32.cont [5/16] 0, 128
    %40 = vxpose.xlu0.b32.cont [6/16] 0, 128
    %41 = vxpose.xlu0.b32.cont [7/16] 0, 128
    %42 = vxpose.xlu0.b32.cont [8/16] 0, 128
    %43 = vxpose.xlu0.b32.cont [9/16] 0, 128
    %44 = vxpose.xlu0.b32.cont [10/16] 0, 128
    %45 = vxpose.xlu0.b32.cont [11/16] 0, 128
    %46 = vxpose.xlu0.b32.cont [12/16] 0, 128
    %47 = vxpose.xlu0.b32.cont [13/16] 0, 128
    %48 = vxpose.xlu0.b32.cont [14/16] 0, 128
    %49 = vxpose.xlu0.b32.cont [15/16] 0, 128
    %50 = vxpose.xlu0.b32.end [16/16] 0, 128
    %v51 = vpop.trf.xlu0
    %v52 = vpop.trf.xlu0
    %v53 = vpop.trf.xlu0
    %v54 = vpop.trf.xlu0
    %v55 = vpop.trf.xlu0
    %v56 = vpop.trf.xlu0
    %v57 = vpop.trf.xlu0
    %v58 = vpop.trf.xlu0
    %v59 = vpop.trf.xlu0
    %v60 = vpop.trf.xlu0
    %v61 = vpop.trf.xlu0
    %v62 = vpop.trf.xlu0
    %v63 = vpop.trf.xlu0
    %v64 = vpop.trf.xlu0
    %v65 = vpop.trf.xlu0
    %v66 = vpop.trf.xlu0
    %v67 = vlaneseq
    %v68 = vand.u32 %v67, 127
    %69 = vset.pattern.permute.xlu0 0
    %70 = vperm.xlu0 %69, %v51
    %v71 = vpop.permute.xlu0 %70
    %vm72 = vcmp.eq.s32.totalorder %v68, %v71
    %v73 = vsel %vm72, 1, 0
    %v74 = vcvt.s32.f32 %v73
    %vm75 = vcmask 31744
    %v76 = vsel %vm75, %v33, -inf
    %77 = vmax.xlane.f32.xlu0 %v76
    %v78 = vpop.xlane.xlu0 %77
    %v79 = vsub.f32 %v33, %v78
    %v80 = vmul.f32 %v79, 1.442695
    %v81 = vpow.pop %v80
    %v82 = vsel %vm75, %v81, 0.0
    %83 = vadd.xlane.f32.xlu0 %v82
    %v84 = vpop.xlane.xlu0 %83
    %v85 = vlog2.pop %v84
    %v86 = vmul.f32 %v85, 0.6931472
    %v87 = vadd.f32 %v78, %v86
    %v88 = vmul.f32 %v74, %v33
    %v89 = vsel %vm75, %v88, 0.0
    %90 = vadd.xlane.f32.xlu0 %v89
    %v91 = vpop.xlane.xlu0 %90
    %v92 = vsub.f32 %v87, %v91
    %vm93 = vcmp.eq.f32.partialorder %v33, %v78
    %v94 = vsel %vm93, %v68, 4
    %v95 = vsel %vm75, %v94, 2147483647
    %v96 = vand.u32 %v95, 65535
    %v97 = vshra.s32 %v95, 16
    %v98 = vcvt.s32.f32 %v96
    %v99 = vcvt.s32.f32 %v97
    %100 = vmin.xlane.f32.xlu0 %v99
    %v101 = vpop.xlane.xlu0 %100
    %vm102 = vcmp.eq.f32.partialorder %v99, %v101
    %v103 = vsel %vm102, %v98, inf
    %104 = vmin.xlane.f32.xlu0 %v103
    %v105 = vpop.xlane.xlu0 %104
    %v106 = vcvt.f32.s32 %v105
    %v107 = vcvt.f32.s32 %v101
    %v108 = vshll.u32 %v107, 16
    %v109 = vadd.s32 %v108, %v106
    %vm110 = vcmp.eq.s32.totalorder %v68, 0
    %v111 = vsub.s32 %v68, 1
    %vm112 = vcmp.eq.s32.totalorder %v111, %v109
    %v113 = vsel %vm112, 1.0, 0.0
    %v114 = vsel %vm110, %v92, %v113
    %v115 = vsel %vm32, %v114, 0.0
    %v116 = vrot.slane %v115, 4
    %v117 = vadd.f32 %v115, %v116
    %v118 = vrot.slane %v117, 2
    %v119 = vadd.f32 %v117, %v118
    %v120 = vrot.slane %v119, 1
    %v121 = vadd.f32 %v119, %v120
    %122 = vst [vmem:[#allocation2] sm:$0x1] %v121
    // Predicated region
    $region18: #{tpu_custom_call.1} parent=1 // pred_check
      _
    $region19: #{tpu_custom_call.1} parent=1 // pred_check_branch
      %124 = sbr.rel (0) target = $region21
    $region20: #{tpu_custom_call.1} parent=1 // pred_region
      %s126 = ssub.s32 16, 16
      %127 = vsyncadd [#allocation3], %s126
      %s129 = sshll.u32 [#allocation2], 4
      %s130 = int_to_ptr.vmem [resolvable:$true] %s129
      %132 = dma.vmem_to_hbm [thread:$0]  %s130, 16, %s4, [#allocation3]
    $region21: #{tpu_custom_call.1} parent=1 // pred_fallthru
      _
    // Predicated region
    $region22: #{tpu_custom_call.1} parent=1 // pred_check
      _
    $region23: #{tpu_custom_call.1} parent=1 // pred_check_branch
      %134 = sbr.rel (0) target = $region25
    $region24: #{tpu_custom_call.1} parent=1 // pred_region
      %135 = dma.done [#allocation3], 16
    $region25: #{tpu_custom_call.1} parent=1 // pred_fallthru
      _
    %136 = vsyncpa [#allocation3], 1

</llo_original>
